<compile_context>
chip_gen: v5e
topology: v5e:2x2
jax: 0.10.0
libtpu: 0.0.40
codegen_flags: <defaults>
</compile_context>

<pallas_src>
import functools

import jax
import jax.numpy as jnp
from jax.experimental import pallas as pl
from jax.experimental.pallas import tpu as pltpu


def _round_up(a: int, b: int) -> int:
    return (a + b - 1) // b * b


def _sublane_pack(itemsize: int) -> int:
    # f32 -> 8 sublanes per vreg, bf16 -> 16, int8/fp8 -> 32.
    return {4: 8, 2: 16, 1: 32}.get(itemsize, 8)


def _default_target_block_bytes() -> int:
    try:
        kind = jax.devices()[0].device_kind.lower()
    except Exception:
        kind = ""
    if "v7" in kind:
        return 8 * 1024 * 1024   # amortize per-step overhead at 3.2 TB/s HBM
    return 4 * 1024 * 1024       # v5e/v6e: already ~85% of roofline


# ---------------------------------------------------------------------------
# Kernels
# ---------------------------------------------------------------------------

def _gap_kernel_single(x_ref, o_ref, *, inv_spatial):
    """Whole spatial extent in one block: reduce + scale in one shot."""
    x = x_ref[...].astype(jnp.float32)                          # (TR, S)
    o_ref[...] = (jnp.sum(x, axis=-1, keepdims=True) * inv_spatial).astype(o_ref.dtype)


def _gap_kernel_multi(x_ref, o_ref, acc_ref, *, inv_spatial, rem, mask_tail):
    """Streaming reduction over spatial chunks (last, "arbitrary" grid axis)."""
    sj = pl.program_id(1)
    last = pl.num_programs(1) - 1

    @pl.when(sj == 0)
    def _init():
        acc_ref[...] = jnp.zeros_like(acc_ref)

    def _accumulate(masked):
        x = x_ref[...].astype(jnp.float32)                      # (TR, S_TILE)
        if masked:
            # Only the final chunk can contain padding lanes; `rem` is static.
            lane = jax.lax.broadcasted_iota(jnp.int32, x.shape, dimension=1)
            x = jnp.where(lane < rem, x, 0.0)                   # 0 is neutral
        acc_ref[...] += jnp.sum(x, axis=-1, keepdims=True)

    if mask_tail:
        # Mask work only on the last chunk, plain vld+vadd everywhere else.
        @pl.when(sj < last)
        def _body():
            _accumulate(masked=False)

        @pl.when(sj == last)
        def _tail():
            _accumulate(masked=True)
    else:
        _accumulate(masked=False)

    @pl.when(sj == last)
    def _finalize():
        o_ref[...] = (acc_ref[...] * inv_spatial).astype(o_ref.dtype)


# ---------------------------------------------------------------------------
# Tiling
# ---------------------------------------------------------------------------

def _choose_tiles(rows, spatial, itemsize, target_block_bytes):
    """Return (row_tile, spatial_tile, single_step, mask_tail)."""
    pack = _sublane_pack(itemsize)
    lane_pad_s = _round_up(spatial, 128)
    tr_min = rows if rows <= pack else pack

    # --- Single spatial step: a whole (tr_min, S) slab fits the budget. -----
    if _round_up(tr_min, pack) * lane_pad_s * itemsize <= target_block_bytes:
        rows_fit = target_block_bytes // (lane_pad_s * itemsize)
        tr = max(tr_min, (rows_fit // pack) * pack)
        tr = min(tr, rows)
        # Give the 2-TC (v7x) "parallel" axis at least two blocks when we can.
        if tr >= rows and rows >= 2 * pack:
            tr = _round_up((rows + 1) // 2, pack)
        return tr, spatial, True, False

    # --- Multi-step: minimal row tile, lane-aligned spatial chunks. ---------
    tr = tr_min
    pad_tr = _round_up(tr, pack)
    budget_lanes = max(128, (target_block_bytes // (pad_tr * itemsize)) // 128 * 128)

    # Prefer a 128-multiple divisor of S near the budget: no tail mask at all
    # and no mostly-padded final DMA per row block.
    d = min(budget_lanes, (spatial // 128) * 128)
    lo = max(128, budget_lanes // 2)
    while d >= lo:
        if d > 0 and spatial % d == 0:
            return tr, d, False, False
        d -= 128

    ts = min(budget_lanes, _round_up(spatial, 128))
    return tr, ts, False, (spatial % ts) != 0


# ---------------------------------------------------------------------------
# Wrapper
# ---------------------------------------------------------------------------

def gap(x: jax.Array, *, target_block_bytes=None) -> jax.Array:
    """Global average pooling. x: (N, C, H, W) -> (N, C)."""
    N, C, H, W = x.shape
    S = H * W
    R = N * C
    if target_block_bytes is None:
        target_block_bytes = _default_target_block_bytes()

    x2 = x.reshape(R, S)                       # rows independent, lanes dense
    itemsize = jnp.dtype(x.dtype).itemsize
    pack = _sublane_pack(itemsize)

    tr, ts, single_step, mask_tail = _choose_tiles(R, S, itemsize, target_block_bytes)

    # Padding-aware scoped-VMEM budget: double-buffered input + output blocks
    # plus the accumulator scratch and headroom.
    pad_tr = _round_up(tr, pack)
    pad_ts = _round_up(ts, 128)
    in_block = pad_tr * pad_ts * itemsize
    out_block = pad_tr * 128 * itemsize
    acc_block = 0 if single_step else pad_tr * 128 * 4
    vmem_limit = max(16 << 20, 2 * in_block + 2 * out_block + acc_block + (2 << 20))

    inv_spatial = 1.0 / float(S)

    if single_step:
        kernel = functools.partial(_gap_kernel_single, inv_spatial=inv_spatial)
        grid = (pl.cdiv(R, tr),)
        in_specs = [pl.BlockSpec((tr, S), lambda i: (i, 0))]
        out_specs = pl.BlockSpec((tr, 1), lambda i: (i, 0))
        scratch_shapes = []
        dim_sem = ("parallel",)
    else:
        kernel = functools.partial(
            _gap_kernel_multi,
            inv_spatial=inv_spatial,
            rem=(S % ts) if mask_tail else ts,
            mask_tail=mask_tail,
        )
        grid = (pl.cdiv(R, tr), pl.cdiv(S, ts))
        in_specs = [pl.BlockSpec((tr, ts), lambda i, j: (i, j))]
        out_specs = pl.BlockSpec((tr, 1), lambda i, j: (i, 0))
        scratch_shapes = [pltpu.VMEM((tr, 1), jnp.float32)]
        dim_sem = ("parallel", "arbitrary")

    # TODO(synk): for N*C smaller than two sublane packs with very large
    # spatial maps, add a two-phase spatial split so both v7x TCs get work.
    out = pl.pallas_call(
        kernel,
        out_shape=jax.ShapeDtypeStruct((R, 1), x.dtype),
        grid_spec=pltpu.PrefetchScalarGridSpec(
            num_scalar_prefetch=0,
            grid=grid,
            in_specs=in_specs,
            out_specs=out_specs,
            scratch_shapes=scratch_shapes,
        ),
        compiler_params=pltpu.CompilerParams(
            dimension_semantics=dim_sem,
            vmem_limit_bytes=int(vmem_limit),
        ),
    )(x2)
    return out.reshape(N, C)


if __name__ == "__main__":
    key = jax.random.PRNGKey(0)
    # Small NCHW input, consistent with the PyTorch module's expected input.
    x = jax.random.normal(key, (2, 4, 16, 16), dtype=jnp.float32)

    out = jax.block_until_ready(gap(x))
    ref = jnp.mean(x, axis=(2, 3))
    assert out.shape == (2, 4), out.shape
    assert jnp.allclose(out, ref, rtol=1e-5, atol=1e-5), "mismatch vs reference"

    # Exercise the multi-step streaming-accumulator path (divisor tile, no
    # mask) with a tiny block budget so it stays compile/correctness-checked.
    x2 = jax.random.normal(jax.random.PRNGKey(1), (2, 4, 32, 36), dtype=jnp.float32)
    out2 = jax.block_until_ready(gap(x2, target_block_bytes=4096))
    assert jnp.allclose(out2, jnp.mean(x2, axis=(2, 3)), rtol=1e-5, atol=1e-5)

    # Exercise the last-chunk tail-mask path (S not a multiple of the tile).
    x3 = jax.random.normal(jax.random.PRNGKey(2), (1, 3, 20, 20), dtype=jnp.float32)
    out3 = jax.block_until_ready(gap(x3, target_block_bytes=4096))
    assert jnp.allclose(out3, jnp.mean(x3, axis=(2, 3)), rtol=1e-5, atol=1e-5)

    print("KERNEL_OK")
</pallas_src>

<mosaic_0001>
module attributes {stable_mosaic.version = 11 : i64} {
  func.func @_gap_kernel_single(%arg0: i32, %arg1: memref<8x256xf32, #tpu.memory_space<vmem>>, %arg2: memref<8x1xf32, #tpu.memory_space<vmem>>) attributes {dimension_semantics = [#tpu.dimension_semantics<parallel>], iteration_bounds = array<i64: 1>, scalar_prefetch = 0 : i64, scratch_operands = 0 : i64, tpu.core_type = #tpu.core_type<tc>, window_params = [{transform_indices = @transform_0, window_bounds = array<i64: 8, 256>}, {transform_indices = @transform_1, window_bounds = array<i64: 8, 1>}]} {
    %c0 = arith.constant 0 : index
    %c0_0 = arith.constant 0 : index
    %0 = vector.load %arg1[%c0, %c0_0] : memref<8x256xf32, #tpu.memory_space<vmem>>, vector<8x256xf32>
    %cst = arith.constant dense<0.000000e+00> : vector<8xf32>
    %1 = vector.multi_reduction <add>, %0, %cst [1] : vector<8x256xf32> to vector<8xf32>
    %2 = vector.shape_cast %1 : vector<8xf32> to vector<8x1xf32>
    %cst_1 = arith.constant 3.906250e-03 : f32
    %3 = vector.broadcast %cst_1 : f32 to vector<8x1xf32>
    %4 = arith.mulf %2, %3 : vector<8x1xf32>
    %c0_2 = arith.constant 0 : index
    %c0_3 = arith.constant 0 : index
    %5 = vector.load %arg2[%c0_2, %c0_3] : memref<8x1xf32, #tpu.memory_space<vmem>>, vector<8x1xf32>
    tpu.vector_store %arg2[%c0_2, %c0_3], %4 {strides = array<i32>} : memref<8x1xf32, #tpu.memory_space<vmem>>, vector<8x1xf32>,
    return
  }
  func.func @transform_0(%arg0: i32) -> (i32, i32) {
    %c0_i32 = arith.constant 0 : i32
    %c0_i32_0 = arith.constant 0 : i32
    return %arg0, %c0_i32 : i32, i32
  }
  func.func @transform_1(%arg0: i32) -> (i32, i32) {
    %c0_i32 = arith.constant 0 : i32
    %c0_i32_0 = arith.constant 0 : i32
    return %arg0, %c0_i32 : i32, i32
  }
}

</mosaic_0001>

<llo_original>
// kernel: tpu_custom_call.1
$region0: #{tpu_custom_call.1}
  #allocation0 [shape = 'u32[]', space=smem, size = 0x4, offset = 0x4, fixed_abs, tag = 'smem constant byte address 0x4 - core index']
  #allocation1 [shape = 'u32[72,128]{1,0:T(1,128)}', space=vmem, size = 0x9000, scoped, tag = 'internal scratch']
  %s0 = inlined_call_operand.hbm [shape: f32[8,256], index: 0, kind: input, shape index: {}]
  %s1 = inlined_call_operand.vmem [shape: f32[8,1], index: 1, kind: output, shape index: {}]
  %s2 = sld [smem:[#allocation0]]
  $region18: #{tpu_custom_call.1} parent=0
    _
  %s4 = ssub.s32 1, %s2
  %s5 = scalar_select 0, %s4, %s2
  $region1: #{tpu_custom_call.1} parent=0
    #allocation2 [shape = 'u8[8192]{0}', space=vmem, size = 0x2000, scoped, tag = 'input window, operand 0, single buffered']
    #allocation3 [shape = 's32[1]{0}', space=sflag, size = 0x4, scoped, tag = 'scoped memory for tpu_custom_call.1']
    %6 = vsyncpa [#allocation3], 0
    // Predicated region
    $region2: #{tpu_custom_call.1} parent=1 // pred_check
      _
    $region3: #{tpu_custom_call.1} parent=1 // pred_check_branch
      %8 = sbr.rel (0) target = $region5
    $region4: #{tpu_custom_call.1} parent=1 // pred_region
      %10 = vsyncadd [#allocation3], 0
      %s12 = sshll.u32 %s0, 4
      %s13 = int_to_ptr.hbm [resolvable:$true] %s12
      %s14 = sshll.u32 [#allocation2], 4
      %s15 = int_to_ptr.vmem [resolvable:$true] %s14
      %17 = dma.hbm_to_vmem [thread:$0]  %s13, 256, %s15, [#allocation3]
    $region5: #{tpu_custom_call.1} parent=1 // pred_fallthru
      _
    // Predicated region
    $region6: #{tpu_custom_call.1} parent=1 // pred_check
      _
    $region7: #{tpu_custom_call.1} parent=1 // pred_check_branch
      %19 = sbr.rel (0) target = $region9
    $region8: #{tpu_custom_call.1} parent=1 // pred_region
      %21 = dma.done [#allocation3], 256
    $region9: #{tpu_custom_call.1} parent=1 // pred_fallthru
      _
    %v22 = vld [vmem:[#allocation2] sm:$0xff]
    %v23 = vld [vmem:[#allocation2 + $0x8] sm:$0xff]
    %v24 = vadd.f32 %v22, %v23
    %25 = vadd.xlane.f32.xlu0 %v24
    %v26 = vpop.xlane.xlu0 %25
    %v27 = vmul.f32 %v26, 0.00390625
    %vm28 = vcmask 7168
    %29 = vst.msk [vmem:[%s1] sm:$0xff] %vm28, %v27
    // Predicated region
    $region10: #{tpu_custom_call.1} parent=1 // pred_check
      _
    $region11: #{tpu_custom_call.1} parent=1 // pred_check_branch
      %31 = sbr.rel (0) target = $region13
    $region12: #{tpu_custom_call.1} parent=1 // pred_region
      _
    $region13: #{tpu_custom_call.1} parent=1 // pred_fallthru
      _
    // Predicated region
    $region14: #{tpu_custom_call.1} parent=1 // pred_check
      _
    $region15: #{tpu_custom_call.1} parent=1 // pred_check_branch
      %33 = sbr.rel (0) target = $region17
    $region16: #{tpu_custom_call.1} parent=1 // pred_region
      _
    $region17: #{tpu_custom_call.1} parent=1 // pred_fallthru
      _
    %34 = vsyncpa [#allocation3], 1

</llo_original>
